<compile_context>
chip_gen: v5e
topology: v5e:2x2
jax: 0.10.0
libtpu: 0.0.40
codegen_flags: <defaults>
</compile_context>

<pallas_src>
import functools

import jax
import jax.numpy as jnp
from jax import lax
from jax.experimental import pallas as pl
from jax.experimental.pallas import tpu as pltpu

EPS = 1e-5          # nn.GroupNorm default
_LANE = 128         # TPU lane width


def _round_up(x, m):
    return (x + m - 1) // m * m


def _cdiv(a, b):
    return (a + b - 1) // b


def _vmem_capacity_bytes():
    # Real device VMEM; conservative fallback (v7x per-TC size) if the query
    # is unavailable in this environment.
    try:
        return int(pltpu.get_tpu_info().vmem_capacity_bytes)
    except Exception:
        return 64 << 20


# ----------------------------- Path A kernel --------------------------------
def _prenorm_kernel(x_ref, w_ref, b_ref, o_ref, *, inv_n, fused_fn):
    # x_ref: (Bt, C, HW). GroupNorm(1, C): one group spanning (C, HW) per sample.
    xf = x_ref[...].astype(jnp.float32)

    # Two-pass statistics: mean, then centered variance (torch parity, no
    # catastrophic cancellation). Data is VMEM-resident, so the extra walk is
    # hidden under the HBM DMA on v5e/v6e and cheap on v7x.
    mean = jnp.sum(xf, axis=(1, 2), keepdims=True) * inv_n          # (Bt,1,1)
    centered = xf - mean
    var = jnp.sum(centered * centered, axis=(1, 2), keepdims=True) * inv_n
    inv = lax.rsqrt(var + EPS)                                      # (Bt,1,1)

    # Per-channel affine, FMA-folded and hoisted once per block:
    #   y = centered * (inv * w) + b   -> 1 mul + 1 add per element.
    w = w_ref[...].astype(jnp.float32)[None, :, :]                  # (1,C,1)
    b = b_ref[...].astype(jnp.float32)[None, :, :]
    a = inv * w                                                     # (Bt,C,1)
    y = centered * a + b
    if fused_fn is not None:
        y = fused_fn(y)        # fused elementwise epilogue (e.g. SiLU)
    o_ref[...] = y.astype(o_ref.dtype)


# ----------------------------- Path B kernels -------------------------------
def _stats_chunk_kernel(x_ref, s_ref, ss_ref, *, hw, hwc):
    # Accumulate per-sample sum / sum-of-squares over HW chunks.
    # TODO(synk): switch to a shifted/Welford accumulation if cross-chunk
    # E[x^2]-E[x]^2 precision ever becomes limiting for huge samples.
    k = pl.program_id(1)

    @pl.when(k == 0)
    def _():
        s_ref[...] = jnp.zeros_like(s_ref)
        ss_ref[...] = jnp.zeros_like(ss_ref)

    xf = x_ref[...].astype(jnp.float32)                   # (1, C, hwc)
    # Mask lanes past the true end of the flattened spatial axis (edge chunk).
    col = lax.broadcasted_iota(jnp.int32, xf.shape, 2) + k * hwc
    xf = jnp.where(col < hw, xf, 0.0)
    s_ref[...] += jnp.sum(xf, axis=(1, 2), keepdims=True)
    ss_ref[...] += jnp.sum(xf * xf, axis=(1, 2), keepdims=True)


def _normalize_chunk_kernel(s_ref, ss_ref, x_ref, w_ref, b_ref, o_ref, *,
                            inv_n, fused_fn):
    xf = x_ref[...].astype(jnp.float32)                   # (1, C, hwc)
    mean = s_ref[...] * inv_n                              # (1,1,1)
    var = jnp.maximum(ss_ref[...] * inv_n - mean * mean, 0.0)
    inv = lax.rsqrt(var + EPS)
    w = w_ref[...].astype(jnp.float32)[None, :, :]
    b = b_ref[...].astype(jnp.float32)[None, :, :]
    a = inv * w                                            # (1,C,1)
    c = b - mean * a
    y = xf * a + c
    if fused_fn is not None:
        y = fused_fn(y)
    o_ref[...] = y.astype(o_ref.dtype)


# -------------------------------- wrapper ------------------------------------
def prenorm_groupnorm_pallas(x, weight, bias, *, fused_fn=None, out_dtype=None):
    """GroupNorm(1, C) on NCHW input, optional fused elementwise epilogue."""
    B, C, H, W = x.shape
    HW = H * W
    out_dtype = jnp.dtype(out_dtype or x.dtype)
    in_dtype = x.dtype

    x3 = x.reshape(B, C, HW)      # contiguous reshape: no extra HBM pass
    w2 = weight.reshape(C, 1)
    b2 = bias.reshape(C, 1)
    inv_n = 1.0 / float(C * HW)

    vmem_cap = _vmem_capacity_bytes()
    budget = int(0.8 * vmem_cap)                 # leave compiler headroom
    per_in = C * HW * in_dtype.itemsize
    per_out = C * HW * out_dtype.itemsize
    per_f32 = C * HW * 4                         # f32 intermediates (xf, centered)
    param_bytes = 2 * 2 * _round_up(C, 8) * _LANE * 4

    def _need(bt):
        # double-buffered in+out blocks + f32 intermediates + params + slack
        return (2 * bt * (per_in + per_out) + 2 * bt * per_f32
                + param_bytes + (2 << 20))

    # ---- Path A: whole sample(s) per block, single fused pass over HBM -----
    if _need(1) <= budget:
        # Bigger blocks on v5e/v6e (128 MiB VMEM) to amortize per-step
        # overhead; smaller on v7x (64 MiB, 2 TCs) to keep pipeline depth.
        target = (8 << 20) if vmem_cap >= (96 << 20) else (2 << 20)
        min_steps = min(B, 8)    # >= ~4 steps per v7x TensorCore when B allows
        bt = 1
        for d in range(B, 0, -1):        # largest divisor of B that fits
            if B % d:
                continue
            if B // d < min_steps:
                continue
            if d * per_in > target:
                continue
            if _need(d) > budget:
                continue
            bt = d
            break
        grid = (B // bt,)

        n_elems = B * C * HW
        cost = pl.CostEstimate(
            flops=8 * n_elems,
            transcendentals=(n_elems if fused_fn is not None else 0) + B,
            bytes_accessed=B * (per_in + per_out) + param_bytes)

        kernel = functools.partial(_prenorm_kernel, inv_n=inv_n,
                                   fused_fn=fused_fn)
        out = pl.pallas_call(
            kernel,
            out_shape=jax.ShapeDtypeStruct((B, C, HW), out_dtype),
            grid_spec=pltpu.PrefetchScalarGridSpec(
                num_scalar_prefetch=0,
                grid=grid,
                in_specs=[
                    pl.BlockSpec((bt, C, HW), lambda i: (i, 0, 0)),
                    pl.BlockSpec((C, 1), lambda i: (0, 0)),   # stays resident
                    pl.BlockSpec((C, 1), lambda i: (0, 0)),   # stays resident
                ],
                out_specs=pl.BlockSpec((bt, C, HW), lambda i: (i, 0, 0)),
            ),
            compiler_params=pltpu.CompilerParams(
                dimension_semantics=("parallel",),
                vmem_limit_bytes=int(min(budget, max(_need(bt), 16 << 20)))),
            cost_estimate=cost,
        )(x3, w2, b2)
        return out.reshape(B, C, H, W)

    # ---- Path B: sample too large for VMEM -> chunked two-pass over HW -----
    chunk_target = 2 << 20
    hwc = max(_LANE,
              (chunk_target // max(C * in_dtype.itemsize, 1)) // _LANE * _LANE)
    hwc = min(hwc, _round_up(HW, _LANE))
    K = _cdiv(HW, hwc)
    chunk_bytes = C * hwc
    chunk_need = (2 * chunk_bytes * (in_dtype.itemsize + out_dtype.itemsize)
                  + 4 * chunk_bytes * 4 + param_bytes + (2 << 20))
    vmem_limit = int(min(budget, max(chunk_need, 16 << 20)))

    stats_kernel = functools.partial(_stats_chunk_kernel, hw=HW, hwc=hwc)
    s, ss = pl.pallas_call(
        stats_kernel,
        out_shape=(jax.ShapeDtypeStruct((B, 1, 1), jnp.float32),
                   jax.ShapeDtypeStruct((B, 1, 1), jnp.float32)),
        grid_spec=pltpu.PrefetchScalarGridSpec(
            num_scalar_prefetch=0,
            grid=(B, K),
            in_specs=[pl.BlockSpec((1, C, hwc), lambda b, k: (b, 0, k))],
            out_specs=(pl.BlockSpec((1, 1, 1), lambda b, k: (b, 0, 0)),
                       pl.BlockSpec((1, 1, 1), lambda b, k: (b, 0, 0))),
        ),
        compiler_params=pltpu.CompilerParams(
            dimension_semantics=("parallel", "arbitrary"),
            vmem_limit_bytes=vmem_limit),
    )(x3)

    norm_kernel = functools.partial(_normalize_chunk_kernel, inv_n=inv_n,
                                    fused_fn=fused_fn)
    out = pl.pallas_call(
        norm_kernel,
        out_shape=jax.ShapeDtypeStruct((B, C, HW), out_dtype),
        grid_spec=pltpu.PrefetchScalarGridSpec(
            num_scalar_prefetch=0,
            grid=(B, K),
            in_specs=[
                pl.BlockSpec((1, 1, 1), lambda b, k: (b, 0, 0)),
                pl.BlockSpec((1, 1, 1), lambda b, k: (b, 0, 0)),
                pl.BlockSpec((1, C, hwc), lambda b, k: (b, 0, k)),
                pl.BlockSpec((C, 1), lambda b, k: (0, 0)),
                pl.BlockSpec((C, 1), lambda b, k: (0, 0)),
            ],
            out_specs=pl.BlockSpec((1, C, hwc), lambda b, k: (b, 0, k)),
        ),
        compiler_params=pltpu.CompilerParams(
            dimension_semantics=("parallel", "arbitrary"),
            vmem_limit_bytes=vmem_limit),
    )(s, ss, x3, w2, b2)
    return out.reshape(B, C, H, W)


class PreNorm:
    """PreNorm: GroupNorm(1, dim) followed by fn (a JAX callable).

    If fn is elementwise (identity, SiLU, ...), pass fn_is_elementwise=True and
    it is fused into the Pallas epilogue, saving one full HBM read+write of the
    activation. Non-elementwise fn (e.g. attention) is applied afterwards.
    """

    def __init__(self, dim, fn, key, fn_is_elementwise=False):
        self.fn = fn
        self.fn_is_elementwise = fn_is_elementwise
        # nn.GroupNorm default init is weight=1, bias=0; use deterministic
        # non-trivial values so the affine path is actually exercised.
        kw, kb = jax.random.split(key)
        self.weight = jax.random.normal(kw, (dim,), jnp.float32) * 0.1 + 1.0
        self.bias = jax.random.normal(kb, (dim,), jnp.float32) * 0.1

    def __call__(self, x):
        if self.fn_is_elementwise:
            return prenorm_groupnorm_pallas(x, self.weight, self.bias,
                                            fused_fn=self.fn)
        y = prenorm_groupnorm_pallas(x, self.weight, self.bias)
        return self.fn(y)


def _prenorm_ref(x, weight, bias, fn):
    B, C, H, W = x.shape
    xf = x.reshape(B, -1).astype(jnp.float32)
    mean = jnp.mean(xf, axis=1, keepdims=True)
    var = jnp.mean((xf - mean) ** 2, axis=1, keepdims=True)
    xn = ((xf - mean) / jnp.sqrt(var + EPS)).reshape(B, C, H, W)
    return fn(xn * weight[None, :, None, None] + bias[None, :, None, None])


if __name__ == "__main__":
    key = jax.random.PRNGKey(0)
    kx, kp = jax.random.split(key)

    B, C, H, W = 2, 4, 16, 16
    x = jax.random.normal(kx, (B, C, H, W), jnp.float32)

    # Elementwise downstream fn (SiLU-style gate), fused into the epilogue.
    fn = lambda y: y * jax.nn.sigmoid(y)

    module = PreNorm(C, fn, kp, fn_is_elementwise=True)
    out = jax.block_until_ready(module(x))
    ref = _prenorm_ref(x, module.weight, module.bias, fn)
    assert out.shape == (B, C, H, W)
    err = float(jnp.max(jnp.abs(out.astype(jnp.float32) - ref)))
    assert jnp.allclose(out, ref, atol=1e-4, rtol=1e-4), err

    # Non-fused path (fn applied outside the kernel, e.g. attention) matches too.
    module2 = PreNorm(C, fn, kp, fn_is_elementwise=False)
    out2 = jax.block_until_ready(module2(x))
    err2 = float(jnp.max(jnp.abs(out2.astype(jnp.float32) - ref)))
    assert jnp.allclose(out2, ref, atol=1e-4, rtol=1e-4), err2

    print("KERNEL_OK")
</pallas_src>

<mosaic_0001>
module attributes {stable_mosaic.version = 11 : i64} {
  func.func @_prenorm_kernel(%arg0: i32, %arg1: memref<1x4x256xf32, #tpu.memory_space<vmem>>, %arg2: memref<4x1xf32, #tpu.memory_space<vmem>>, %arg3: memref<4x1xf32, #tpu.memory_space<vmem>>, %arg4: memref<1x4x256xf32, #tpu.memory_space<vmem>>) attributes {dimension_semantics = [#tpu.dimension_semantics<parallel>], iteration_bounds = array<i64: 2>, scalar_prefetch = 0 : i64, scratch_operands = 0 : i64, tpu.core_type = #tpu.core_type<tc>, window_params = [{transform_indices = @transform_0, window_bounds = array<i64: 1, 4, 256>}, {pipeline_mode = #tpu.pipeline_mode<synchronous>, transform_indices = @transform_1, window_bounds = array<i64: 4, 1>}, {pipeline_mode = #tpu.pipeline_mode<synchronous>, transform_indices = @transform_2, window_bounds = array<i64: 4, 1>}, {transform_indices = @transform_3, window_bounds = array<i64: 1, 4, 256>}]} {
    %c0 = arith.constant 0 : index
    %c0_0 = arith.constant 0 : index
    %c0_1 = arith.constant 0 : index
    %0 = vector.load %arg1[%c0, %c0_0, %c0_1] : memref<1x4x256xf32, #tpu.memory_space<vmem>>, vector<1x4x256xf32>
    %cst = arith.constant dense<0.000000e+00> : vector<1xf32>
    %1 = vector.multi_reduction <add>, %0, %cst [1, 2] : vector<1x4x256xf32> to vector<1xf32>
    %2 = vector.shape_cast %1 : vector<1xf32> to vector<1x1x1xf32>
    %cst_2 = arith.constant 9.765625E-4 : f32
    %3 = vector.broadcast %cst_2 : f32 to vector<1x1x1xf32>
    %4 = arith.mulf %2, %3 : vector<1x1x1xf32>
    %5 = vector.broadcast %4 : vector<1x1x1xf32> to vector<1x4x256xf32>
    %6 = arith.subf %0, %5 : vector<1x4x256xf32>
    %7 = arith.mulf %6, %6 : vector<1x4x256xf32>
    %cst_3 = arith.constant dense<0.000000e+00> : vector<1xf32>
    %8 = vector.multi_reduction <add>, %7, %cst_3 [1, 2] : vector<1x4x256xf32> to vector<1xf32>
    %9 = vector.shape_cast %8 : vector<1xf32> to vector<1x1x1xf32>
    %cst_4 = arith.constant 9.765625E-4 : f32
    %10 = vector.broadcast %cst_4 : f32 to vector<1x1x1xf32>
    %11 = arith.mulf %9, %10 : vector<1x1x1xf32>
    %cst_5 = arith.constant 9.99999974E-6 : f32
    %12 = vector.broadcast %cst_5 : f32 to vector<1x1x1xf32>
    %13 = arith.addf %11, %12 : vector<1x1x1xf32>
    %14 = math.rsqrt %13 : vector<1x1x1xf32>
    %c0_6 = arith.constant 0 : index
    %c0_7 = arith.constant 0 : index
    %15 = vector.load %arg2[%c0_6, %c0_7] : memref<4x1xf32, #tpu.memory_space<vmem>>, vector<4x1xf32>
    %16 = vector.shape_cast %15 : vector<4x1xf32> to vector<1x4x1xf32>
    %c0_8 = arith.constant 0 : index
    %c0_9 = arith.constant 0 : index
    %17 = vector.load %arg3[%c0_8, %c0_9] : memref<4x1xf32, #tpu.memory_space<vmem>>, vector<4x1xf32>
    %18 = vector.shape_cast %17 : vector<4x1xf32> to vector<1x4x1xf32>
    %19 = vector.broadcast %14 : vector<1x1x1xf32> to vector<1x4x1xf32>
    %20 = arith.mulf %19, %16 : vector<1x4x1xf32>
    %21 = vector.broadcast %20 : vector<1x4x1xf32> to vector<1x4x256xf32>
    %22 = arith.mulf %6, %21 : vector<1x4x256xf32>
    %23 = vector.broadcast %18 : vector<1x4x1xf32> to vector<1x4x256xf32>
    %24 = arith.addf %22, %23 : vector<1x4x256xf32>
    %25 = arith.negf %24 : vector<1x4x256xf32>
    %26 = math.exp %25 : vector<1x4x256xf32>
    %cst_10 = arith.constant 1.000000e+00 : f32
    %27 = vector.broadcast %cst_10 : f32 to vector<1x4x256xf32>
    %28 = arith.addf %27, %26 : vector<1x4x256xf32>
    %29 = arith.divf %27, %28 : vector<1x4x256xf32>
    %30 = arith.mulf %24, %29 : vector<1x4x256xf32>
    %c0_11 = arith.constant 0 : index
    %c0_12 = arith.constant 0 : index
    %c0_13 = arith.constant 0 : index
    %31 = vector.load %arg4[%c0_11, %c0_12, %c0_13] : memref<1x4x256xf32, #tpu.memory_space<vmem>>, vector<1x4x256xf32>
    tpu.vector_store %arg4[%c0_11, %c0_12, %c0_13], %30 {strides = array<i32>} : memref<1x4x256xf32, #tpu.memory_space<vmem>>, vector<1x4x256xf32>,
    return
  }
  func.func @transform_0(%arg0: i32) -> (i32, i32, i32) {
    %c0_i32 = arith.constant 0 : i32
    %c0_i32_0 = arith.constant 0 : i32
    %c0_i32_1 = arith.constant 0 : i32
    return %arg0, %c0_i32, %c0_i32_0 : i32, i32, i32
  }
  func.func @transform_1(%arg0: i32) -> (i32, i32) {
    %c0_i32 = arith.constant 0 : i32
    %c0_i32_0 = arith.constant 0 : i32
    %c0_i32_1 = arith.constant 0 : i32
    return %c0_i32, %c0_i32_0 : i32, i32
  }
  func.func @transform_2(%arg0: i32) -> (i32, i32) {
    %c0_i32 = arith.constant 0 : i32
    %c0_i32_0 = arith.constant 0 : i32
    %c0_i32_1 = arith.constant 0 : i32
    return %c0_i32, %c0_i32_0 : i32, i32
  }
  func.func @transform_3(%arg0: i32) -> (i32, i32, i32) {
    %c0_i32 = arith.constant 0 : i32
    %c0_i32_0 = arith.constant 0 : i32
    %c0_i32_1 = arith.constant 0 : i32
    return %arg0, %c0_i32, %c0_i32_0 : i32, i32, i32
  }
}

</mosaic_0001>

<llo_original>
// kernel: tpu_custom_call.1
$region0: #{tpu_custom_call.1}
  #allocation0 [shape = 'u32[]', space=smem, size = 0x4, offset = 0x4, fixed_abs, tag = 'smem constant byte address 0x4 - core index']
  #allocation1 [shape = 'u32[72,128]{1,0:T(1,128)}', space=vmem, size = 0x9000, scoped, tag = 'internal scratch']
  %s0 = inlined_call_operand.hbm [shape: f32[2,4,256], index: 0, kind: input, shape index: {}]
  %s1 = inlined_call_operand.vmem [shape: f32[4,1], index: 1, kind: input, shape index: {}]
  %s2 = inlined_call_operand.vmem [shape: f32[4,1], index: 2, kind: input, shape index: {}]
  %s3 = inlined_call_operand.hbm [shape: f32[2,4,256], index: 3, kind: output, shape index: {}]
  %s4 = sld [smem:[#allocation0]]
  $region49: #{tpu_custom_call.1} parent=0
    _
  %s6 = ssub.s32 1, %s4
  %s7 = scalar_select 0, %s6, %s4
  $region1: #{tpu_custom_call.1} parent=0
    #allocation2 [shape = 'u8[8192]{0}', space=vmem, size = 0x2000, scoped, tag = 'input window, operand 0']
    #allocation3 [shape = 's32[2]{0}', space=sflag, size = 0x8, scoped, tag = 'scoped memory for tpu_custom_call.1']
    #allocation4 [shape = 's32[2]{0}', space=sflag, size = 0x8, scoped, tag = 'scoped memory for tpu_custom_call.1']
    #allocation5 [shape = 'u8[8192]{0}', space=vmem, size = 0x2000, scoped, tag = 'output window, operand 0']
    %8 = vsyncpa [#allocation3], 0
    %s9 = scalar_lea.sflag [#allocation3], 1
    %10 = vsyncpa %s9, 0
    %11 = vsyncpa [#allocation4], 0
    %s12 = scalar_lea.sflag [#allocation4], 1
    %13 = vsyncpa %s12, 0
    loop: start=0, step=1, limit=4
    $region2: #{tpu_custom_call.1} parent=1 // loop_pre_header
      _
    $region3: #{tpu_custom_call.1} parent=1 // loop_header
      %s15 = sphi 0, %s19
      %p16 = scmp.ge.s32.totalorder %s15, 4
      %s25 = sphi 0, %s27
      %s28 = sphi 0, %s25
      %s29 = sphi 0, %s28
      %s45 = sphi 0, %s29
      %s49 = sphi 0, %s49
      %s51 = sphi 0, %s49
      %s52 = sphi 0, %s51
      %s66 = sphi 0, %s52
      %s70 = sphi 0, %s70
      %s72 = sphi 0, %s70
      %s73 = sphi 0, %s72
      %s87 = sphi 0, %s73
      %s93 = sphi 0, %s95
      %s96 = sphi 0, %s93
      %s97 = sphi 0, %s96
      %s113 = sphi 0, %s97
    $region4: #{tpu_custom_call.1} parent=1 // loop_header_branch
      %18 = sbr.rel (%p16) target = $region8
    $region5: #{tpu_custom_call.1} parent=1 // loop_body
      %s20 = ssub.s32 %s15, 1
      %s21 = ssub.s32 %s15, 2
      %s22 = sadd.s32 %s15, 1
      %s23 = ssub.s32 %s15, %s22
      %p24 = scmp.eq.s32.totalorder %s23, 0
      %s26 = sadd.s32 %s25, 1
      %s27 = scalar_select %p24, %s25, %s26
      %p30 = pneg %p24
      %p31 = scmp.eq.s32.totalorder %s15, 1
      %p32 = por %p30, %p31
      %p33 = scmp.ne.s32.totalorder %s25, %s28
      %p34 = scmp.eq.s32.totalorder %s15, 0
      %p35 = por %p33, %p34
      %p36 = scmp.ne.s32.totalorder %s25, %s28
      %p37 = scmp.eq.s32.totalorder %s20, 1
      %p38 = por %p36, %p37
      %p39 = scmp.ne.s32.totalorder %s28, %s29
      %p40 = scmp.eq.s32.totalorder %s20, 0
      %p41 = por %p39, %p40
      %p42 = scmp.ne.s32.totalorder %s28, %s29
      %p43 = scmp.eq.s32.totalorder %s21, 1
      %p44 = por %p42, %p43
      %p46 = scmp.ne.s32.totalorder %s29, %s45
      %p47 = scmp.eq.s32.totalorder %s21, 0
      %p48 = por %p46, %p47
      %s50 = sadd.s32 %s49, 1
      %p53 = scmp.eq.s32.totalorder %s15, 1
      %p54 = scmp.ne.s32.totalorder %s49, %s51
      %p55 = scmp.eq.s32.totalorder %s15, 0
      %p56 = por %p54, %p55
      %p57 = scmp.ne.s32.totalorder %s49, %s51
      %p58 = scmp.eq.s32.totalorder %s20, 1
      %p59 = por %p57, %p58
      %p60 = scmp.ne.s32.totalorder %s51, %s52
      %p61 = scmp.eq.s32.totalorder %s20, 0
      %p62 = por %p60, %p61
      %p63 = scmp.ne.s32.totalorder %s51, %s52
      %p64 = scmp.eq.s32.totalorder %s21, 1
      %p65 = por %p63, %p64
      %p67 = scmp.ne.s32.totalorder %s52, %s66
      %p68 = scmp.eq.s32.totalorder %s21, 0
      %p69 = por %p67, %p68
      %s71 = sadd.s32 %s70, 1
      %p74 = scmp.eq.s32.totalorder %s15, 1
      %p75 = scmp.ne.s32.totalorder %s70, %s72
      %p76 = scmp.eq.s32.totalorder %s15, 0
      %p77 = por %p75, %p76
      %p78 = scmp.ne.s32.totalorder %s70, %s72
      %p79 = scmp.eq.s32.totalorder %s20, 1
      %p80 = por %p78, %p79
      %p81 = scmp.ne.s32.totalorder %s72, %s73
      %p82 = scmp.eq.s32.totalorder %s20, 0
      %p83 = por %p81, %p82
      %p84 = scmp.ne.s32.totalorder %s72, %s73
      %p85 = scmp.eq.s32.totalorder %s21, 1
      %p86 = por %p84, %p85
      %p88 = scmp.ne.s32.totalorder %s73, %s87
      %p89 = scmp.eq.s32.totalorder %s21, 0
      %p90 = por %p88, %p89
      %s91 = ssub.s32 %s15, %s22
      %p92 = scmp.eq.s32.totalorder %s91, 0
      %s94 = sadd.s32 %s93, 1
      %s95 = scalar_select %p92, %s93, %s94
      %p98 = pneg %p92
      %p99 = scmp.eq.s32.totalorder %s15, 1
      %p100 = por %p98, %p99
      %p101 = scmp.ne.s32.totalorder %s93, %s96
      %p102 = scmp.eq.s32.totalorder %s15, 0
      %p103 = por %p101, %p102
      %p104 = scmp.ne.s32.totalorder %s93, %s96
      %p105 = scmp.eq.s32.totalorder %s20, 1
      %p106 = por %p104, %p105
      %p107 = scmp.ne.s32.totalorder %s96, %s97
      %p108 = scmp.eq.s32.totalorder %s20, 0
      %p109 = por %p107, %p108
      %p110 = scmp.ne.s32.totalorder %s96, %s97
      %p111 = scmp.eq.s32.totalorder %s21, 1
      %p112 = por %p110, %p111
      %p114 = scmp.ne.s32.totalorder %s97, %s113
      %p115 = scmp.eq.s32.totalorder %s21, 0
      %p116 = por %p114, %p115
      %p117 = scmp.le.s32.totalorder 1, %s15
      %p118 = scmp.lt.s32.totalorder %s15, 3
      %p119 = pnand %p117, %p118
      %p120 = pneg %p119
      // Predicated region
      $region9: #{tpu_custom_call.1} parent=5 // pred_check
        _
      $region10: #{tpu_custom_call.1} parent=5 // pred_check_branch
        %122 = sbr.rel (%p119) target = $region12
      $region11: #{tpu_custom_call.1} parent=5 // pred_region
        %s123 = ssub.s32 %s15, 1
        // Predicated region
        $region13: #{tpu_custom_call.1} parent=11 // pred_check
          %p124 = pneg %p62
        $region14: #{tpu_custom_call.1} parent=11 // pred_check_branch
          %126 = sbr.rel (%p124) target = $region16
        $region15: #{tpu_custom_call.1} parent=11 // pred_region
          _
        $region16: #{tpu_custom_call.1} parent=11 // pred_fallthru
          _
        // Predicated region
        $region17: #{tpu_custom_call.1} parent=11 // pred_check
          %p127 = pneg %p83
        $region18: #{tpu_custom_call.1} parent=11 // pred_check_branch
          %129 = sbr.rel (%p127) target = $region20
        $region19: #{tpu_custom_call.1} parent=11 // pred_region
          _
        $region20: #{tpu_custom_call.1} parent=11 // pred_fallthru
          _
      $region12: #{tpu_custom_call.1} parent=5 // pred_fallthru
        _
      %p130 = scmp.lt.s32.totalorder %s15, 2
      // Predicated region
      $region21: #{tpu_custom_call.1} parent=5 // pred_check
        %p131 = pneg %p130
      $region22: #{tpu_custom_call.1} parent=5 // pred_check_branch
        %133 = sbr.rel (%p131) target = $region24
      $region23: #{tpu_custom_call.1} parent=5 // pred_region
        // Predicated region
        $region25: #{tpu_custom_call.1} parent=23 // pred_check
          %p134 = pneg %p35
        $region26: #{tpu_custom_call.1} parent=23 // pred_check_branch
          %136 = sbr.rel (%p134) target = $region28
        $region27: #{tpu_custom_call.1} parent=23 // pred_region
          %s137 = sand.u32 %s25, 1
          %s138 = scalar_lea.sflag [#allocation3], %s137
          %s139 = sand.u32 %s25, 1
          %s140 = smul.addr %s139, 8
          %s141 = scalar_lea.vmem [#allocation2], %s140
          %143 = vsyncadd %s138, 0
          %s144 = smul.addr %s15, 2
          %s145 = smul.addr %s144, 4
          %s146 = scalar_lea.hbm %s0, %s145
          %s148 = sshll.u32 %s146, 4
          %s149 = int_to_ptr.hbm [resolvable:$true] %s148
          %s150 = sshll.u32 %s141, 4
          %s151 = int_to_ptr.vmem [resolvable:$true] %s150
          %153 = dma.hbm_to_vmem [thread:$0]  %s149, 128, %s151, %s138
        $region28: #{tpu_custom_call.1} parent=23 // pred_fallthru
          _
      $region24: #{tpu_custom_call.1} parent=5 // pred_fallthru
        _
      %p154 = scmp.le.s32.totalorder 1, %s15
      %p155 = scmp.lt.s32.totalorder %s15, 3
      %p156 = pnand %p154, %p155
      %p157 = pneg %p156
      // Predicated region
      $region29: #{tpu_custom_call.1} parent=5 // pred_check
        _
      $region30: #{tpu_custom_call.1} parent=5 // pred_check_branch
        %159 = sbr.rel (%p156) target = $region32
      $region31: #{tpu_custom_call.1} parent=5 // pred_region
        %s160 = ssub.s32 %s15, 1
        %s161 = sand.u32 %s28, 1
        %s162 = scalar_lea.sflag [#allocation3], %s161
        %s163 = sand.u32 %s28, 1
        %s164 = smul.addr %s163, 8
        %s165 = scalar_lea.vmem [#allocation2], %s164
        // Predicated region
        $region33: #{tpu_custom_call.1} parent=31 // pred_check
          %p166 = pneg %p41
        $region34: #{tpu_custom_call.1} parent=31 // pred_check_branch
          %168 = sbr.rel (%p166) target = $region36
        $region35: #{tpu_custom_call.1} parent=31 // pred_region
          %170 = dma.done %s162, 128
        $region36: #{tpu_custom_call.1} parent=31 // pred_fallthru
          _
        %s171 = sand.u32 %s28, 1
        %s172 = scalar_lea.sflag [#allocation3], %s171
        %s173 = sand.u32 %s28, 1
        %s174 = smul.addr %s173, 8
        %s175 = scalar_lea.vmem [#allocation2], %s174
        %p176 = pneg %p41
        %p177 = pneg %p38
        %p178 = pneg %p62
        %p179 = pneg %p59
        %p180 = pneg %p83
        %p181 = pneg %p80
        %p182 = pneg %p109
        %p183 = pneg %p106
        %s184 = sand.u32 %s96, 1
        %s185 = scalar_lea.sflag [#allocation4], %s184
        %s186 = sand.u32 %s96, 1
        %s187 = smul.addr %s186, 8
        %s188 = scalar_lea.vmem [#allocation5], %s187
        %v189 = vld [vmem:[%s165] sm:$0xff]
        %191 = vst [vmem:[#allocation1] ss:$2 sm:$0xff] %v189
        %v192 = vld.sshfl [vmem:[#allocation1] sm:$0xff pattern:$0x75316420]
        %v193 = vld.sshfl [vmem:[#allocation1 + $0x8] sm:$0xff pattern:$0x75316420]
        %vm196 = vcmask 1043456
        %v197 = vsel %vm196, %v192, 0.0
        %v198 = vsel %vm196, %v193, 0.0
        %v199 = vadd.f32 %v197, %v198
        %200 = vadd.xlane.f32.xlu0 %v199
        %v201 = vpop.xlane.xlu0 %200
        %v202 = vrot.slane %v201, 4
        %v203 = vadd.f32 %v201, %v202
        %v204 = vrot.slane %v203, 2
        %v205 = vadd.f32 %v203, %v204
        %v206 = vrot.slane %v205, 1
        %v207 = vadd.f32 %v205, %v206
        %v208 = vmul.f32 %v207, 0.0009765625
        %v209 = vsub.f32 %v189, %v208
        %v210 = vmul.f32 %v209, %v209
        %212 = vst [vmem:[#allocation1] ss:$2 sm:$0xff] %v210
        %v213 = vld.sshfl [vmem:[#allocation1] sm:$0xff pattern:$0x75316420]
        %v214 = vld.sshfl [vmem:[#allocation1 + $0x8] sm:$0xff pattern:$0x75316420]
        %v217 = vsel %vm196, %v213, 0.0
        %v218 = vsel %vm196, %v214, 0.0
        %v219 = vadd.f32 %v217, %v218
        %220 = vadd.xlane.f32.xlu0 %v219
        %v221 = vpop.xlane.xlu0 %220
        %v222 = vrot.slane %v221, 4
        %v223 = vadd.f32 %v221, %v222
        %v224 = vrot.slane %v223, 2
        %v225 = vadd.f32 %v223, %v224
        %v226 = vrot.slane %v225, 1
        %v227 = vadd.f32 %v225, %v226
        %v228 = vmul.f32 %v227, 0.0009765625
        %v229 = vadd.f32 %v228, 1e-05
        %v230 = vrsqrt.pop %v229
        %v231 = vmul.f32 %v230, %v229
        %v232 = vmul.f32 %v231, %v230
        %v233 = vmul.f32 0.5, %v232
        %v234 = vsub.f32 1.5, %v233
        %v235 = vmul.f32 %v230, %v234
        %vm236 = vweird.f32 %v229
        %vm237 = vweird.f32 %v230
        %vm238 = vmor %vm236, %vm237
        %v239 = vsel %vm238, %v230, %v235
        %v240 = vld [vmem:[%s1] sm:$0xf]
        %v241 = vld [vmem:[%s2] sm:$0xf]
        %v242 = vmul.f32 %v239, %v240
        %244 = vset.pattern.permute.xlu0 0
        %245 = vperm.xlu0 %244, %v242
        %v246 = vpop.permute.xlu0 %245
        %v248 = vunpack.c.l.s4 839922192
        %v249 = vunpack.c.0.s8 %v248
        %v250 = vperm.slane %v246, %v249
        %v252 = vmul.f32 %v209, %v250
        %254 = vset.pattern.permute.xlu0 0
        %255 = vperm.xlu0 %254, %v241
        %v256 = vpop.permute.xlu0 %255
        %v258 = vunpack.c.l.s4 839922192
        %v259 = vunpack.c.0.s8 %v258
        %v260 = vperm.slane %v256, %v259
        %v262 = vadd.f32 %v252, %v260
        %v263 = vxor.u32 %v262, 2147483648
        %v264 = vmul.f32 %v263, 1.442695
        %v265 = vpow.pop %v264
        %v266 = vadd.f32 %v265, 1.0
        %v267 = vrcp.pop %v266
        %v268 = vmul.f32 %v266, %v267
        %v269 = vsub.f32 1.0, %v268
        %v270 = vmul.f32 %v267, %v269
        %v271 = vadd.f32 %v267, %v270
        %vm272 = vweird.f32 %v266
        %vm273 = vweird.f32 %v267
        %vm274 = vmor %vm272, %vm273
        %v275 = vsel %vm274, %v267, %v271
        %v276 = vand.u32 2147483647, %v266
        %vm277 = vcmp.eq.f32.partialorder %v276, 8.507059e+37
        %v278 = vand.u32 %v266, 2147483648
        %v279 = vor.u32 1.1754944e-38, %v278
        %v280 = vsel %vm277, %v279, %v275
        %v281 = vmul.f32 1.0, %v280
        %v282 = vmul.f32 %v262, %v281
        %283 = vst [vmem:[%s188] sm:$0xff] %v282
        %s284 = sand.u32 %s96, 1
        %s285 = scalar_lea.sflag [#allocation4], %s284
        %s286 = sand.u32 %s96, 1
        %s287 = smul.addr %s286, 8
        %s288 = scalar_lea.vmem [#allocation5], %s287
        // Predicated region
        $region37: #{tpu_custom_call.1} parent=31 // pred_check
          %p289 = pneg %p106
        $region38: #{tpu_custom_call.1} parent=31 // pred_check_branch
          %291 = sbr.rel (%p289) target = $region40
        $region39: #{tpu_custom_call.1} parent=31 // pred_region
          %293 = vsyncadd %s285, 0
          %s294 = smul.addr %s20, 2
          %s295 = smul.addr %s294, 4
          %s296 = scalar_lea.hbm %s3, %s295
          %s298 = sshll.u32 %s288, 4
          %s299 = int_to_ptr.vmem [resolvable:$true] %s298
          %s300 = sshll.u32 %s296, 4
          %s301 = int_to_ptr.hbm [resolvable:$true] %s300
          %303 = dma.vmem_to_hbm [thread:$0]  %s299, 128, %s301, %s285
        $region40: #{tpu_custom_call.1} parent=31 // pred_fallthru
          _
      $region32: #{tpu_custom_call.1} parent=5 // pred_fallthru
        _
      %p304 = scmp.le.s32.totalorder 2, %s15
      // Predicated region
      $region41: #{tpu_custom_call.1} parent=5 // pred_check
        %p305 = pneg %p304
      $region42: #{tpu_custom_call.1} parent=5 // pred_check_branch
        %307 = sbr.rel (%p305) target = $region44
      $region43: #{tpu_custom_call.1} parent=5 // pred_region
        %s308 = ssub.s32 %s15, 2
        // Predicated region
        $region45: #{tpu_custom_call.1} parent=43 // pred_check
          %p309 = pneg %p112
        $region46: #{tpu_custom_call.1} parent=43 // pred_check_branch
          %311 = sbr.rel (%p309) target = $region48
        $region47: #{tpu_custom_call.1} parent=43 // pred_region
          %s312 = sand.u32 %s97, 1
          %s313 = scalar_lea.sflag [#allocation4], %s312
          %s314 = sand.u32 %s97, 1
          %s315 = smul.addr %s314, 8
          %s316 = scalar_lea.vmem [#allocation5], %s315
          %318 = dma.done %s313, 128
        $region48: #{tpu_custom_call.1} parent=43 // pred_fallthru
          _
      $region44: #{tpu_custom_call.1} parent=5 // pred_fallthru
        _
    $region6: #{tpu_custom_call.1} parent=1 // loop_footer
      %s19 = sadd.s32 1, %s15
    $region7: #{tpu_custom_call.1} parent=1 // loop_footer_branch
      %14 = sbr.rel target = $region3
    $region8: #{tpu_custom_call.1} parent=1 // loop_exit
      _
    %319 = vsyncpa [#allocation3], 1
    %s320 = scalar_lea.sflag [#allocation3], 1
    %321 = vsyncpa %s320, 1
    %322 = vsyncpa [#allocation4], 1
    %s323 = scalar_lea.sflag [#allocation4], 1
    %324 = vsyncpa %s323, 1

</llo_original>
